<compile_context>
chip_gen: v6e
topology: v6e:2x2x1
jax: 0.10.0
libtpu: 0.0.40
codegen_flags: <defaults>
</compile_context>

<pallas_src>
import jax
import jax.numpy as jnp
from jax.experimental import pallas as pl
from jax.experimental.pallas import tpu as pltpu


def _critic_kernel(xs_ref, xa_ref, w1s_ref, w1a_ref, b1_ref, w2_ref, b2_ref,
                   w3_ref, b3_ref, out_ref):
    # Activations arrive batch-major [TB, F] in f32; cast to bf16 for the MXU.
    xs = xs_ref[...].astype(jnp.bfloat16)                        # [TB, S]
    xa = xa_ref[...].astype(jnp.bfloat16)                        # [TB, A]

    # Layer 1: relu(x @ W1^T + b1) with the concat folded into two dots.
    h1 = jnp.dot(xs, w1s_ref[...], preferred_element_type=jnp.float32)
    h1 = h1 + jnp.dot(xa, w1a_ref[...], preferred_element_type=jnp.float32)
    h1 = jnp.maximum(h1 + b1_ref[...], 0.0)                      # [TB, H] f32

    # Layer 2: relu(h1 @ W2^T + b2).
    h2 = jnp.dot(h1.astype(jnp.bfloat16), w2_ref[...],
                 preferred_element_type=jnp.float32)
    h2 = jnp.maximum(h2 + b2_ref[...], 0.0)                      # [TB, H1] f32

    # Layer 3 (N=1 head): keep it off the MXU -- VPU multiply + lane reduce.
    q = jnp.sum(h2 * w3_ref[...], axis=1, keepdims=True) + b3_ref[0, 0]
    out_ref[...] = q                                             # [TB, 1]


def _round_up(x, m):
    return ((x + m - 1) // m) * m


def _select_tile(batch, tile_b):
    """Batch-tile width (multiple of 128)."""
    tile_b = _round_up(max(int(tile_b), 128), 128)
    b128 = _round_up(batch, 128)
    # Small/medium batches: one grid step that exactly covers the batch.
    tile_b = min(tile_b, b128)
    # If a single (large) tile would cover everything, split in two balanced
    # tiles so dual-TensorCore chips (v7x) can shard the grid.
    if tile_b == b128 and tile_b >= 2048:
        tile_b = _round_up((b128 + 1) // 2, 128)
    return tile_b


def critic_forward(state, action, params, *, tile_b=2048):
    """Pallas forward pass. state: [B, S], action: [B, A] -> q: [B, 1] f32."""
    batch = state.shape[0]
    if batch == 0:
        return jnp.zeros((0, 1), jnp.float32)

    s_dim = state.shape[1]
    a_dim = action.shape[1]
    feat_in = s_dim + a_dim
    hidden = params["w1"].shape[0]
    hidden1 = params["w2"].shape[0]

    tile = _select_tile(batch, tile_b)
    num_tiles = pl.cdiv(batch, tile)

    # Activations go in untouched (just ensure f32, as PyTorch's .float()).
    state32 = state.astype(jnp.float32)
    action32 = action.astype(jnp.float32)

    # Tiny, constant weight re-layouts in the wrapper (free).
    w1 = params["w1"].astype(jnp.float32)                  # [H, S+A] (PyTorch)
    w1s_t = w1[:, :s_dim].T.astype(jnp.bfloat16)           # [S, H]
    w1a_t = w1[:, s_dim:].T.astype(jnp.bfloat16)           # [A, H]
    w2_t = params["w2"].T.astype(jnp.bfloat16)             # [H, H1]
    b1 = params["b1"].reshape(1, hidden).astype(jnp.float32)
    b2 = params["b2"].reshape(1, hidden1).astype(jnp.float32)
    w3 = params["w3"].reshape(1, hidden1).astype(jnp.float32)
    b3 = params["b3"].reshape(1, 1).astype(jnp.float32)    # SMEM scalar

    flops = 2 * batch * (feat_in * hidden + hidden * hidden1 + hidden1)
    bytes_accessed = (batch * (4 * feat_in + 4)
                      + 2 * (feat_in * hidden + hidden * hidden1)
                      + 4 * (hidden + 2 * hidden1 + 1))

    out = pl.pallas_call(
        _critic_kernel,
        out_shape=jax.ShapeDtypeStruct((batch, 1), jnp.float32),
        grid=(num_tiles,),
        in_specs=[
            pl.BlockSpec((tile, s_dim), lambda i: (i, 0)),       # state tile
            pl.BlockSpec((tile, a_dim), lambda i: (i, 0)),       # action tile
            pl.BlockSpec((s_dim, hidden), lambda i: (0, 0)),     # W1_s^T (pinned)
            pl.BlockSpec((a_dim, hidden), lambda i: (0, 0)),     # W1_a^T (pinned)
            pl.BlockSpec((1, hidden), lambda i: (0, 0)),         # b1 (pinned)
            pl.BlockSpec((hidden, hidden1), lambda i: (0, 0)),   # W2^T (pinned)
            pl.BlockSpec((1, hidden1), lambda i: (0, 0)),        # b2 (pinned)
            pl.BlockSpec((1, hidden1), lambda i: (0, 0)),        # w3 (pinned)
            pl.BlockSpec(memory_space=pltpu.MemorySpace.SMEM),   # b3 scalar
        ],
        out_specs=pl.BlockSpec((tile, 1), lambda i: (i, 0)),
        compiler_params=pltpu.CompilerParams(
            dimension_semantics=("parallel",),
            vmem_limit_bytes=48 * 1024 * 1024),
        cost_estimate=pl.CostEstimate(
            flops=flops, transcendentals=0, bytes_accessed=bytes_accessed),
    )(state32, action32, w1s_t, w1a_t, b1, w2_t, b2, w3, b3)

    return out


def init_critic_params(key, states_dim, actions_dim, hidden_dim, hidden_dim1,
                       init_w=0.003):
    """Init mirroring PyTorch defaults (uniform +/- 1/sqrt(fan_in)) for
    linear1/linear2 and uniform(-init_w, init_w) for linear3.
    Weights stored in PyTorch [out_features, in_features] layout."""
    ks = jax.random.split(key, 6)
    in1 = states_dim + actions_dim

    def unif(k, shape, bound):
        return jax.random.uniform(k, shape, jnp.float32, -bound, bound)

    bound1 = 1.0 / (in1 ** 0.5)
    bound2 = 1.0 / (hidden_dim ** 0.5)

    return {
        "w1": unif(ks[0], (hidden_dim, in1), bound1),           # [H,  S+A]
        "b1": unif(ks[1], (hidden_dim,), bound1),               # [H]
        "w2": unif(ks[2], (hidden_dim1, hidden_dim), bound2),   # [H1, H]
        "b2": unif(ks[3], (hidden_dim1,), bound2),              # [H1]
        "w3": unif(ks[4], (1, hidden_dim1), init_w),            # [1,  H1]
        "b3": unif(ks[5], (1,), init_w),                        # [1]
    }


def critic_reference(state, action, params):
    """Plain-JAX reference mirroring the kernel numerics (bf16 operands,
    f32 accumulation) of the PyTorch forward."""
    x = jnp.concatenate([state.astype(jnp.float32),
                         action.astype(jnp.float32)], axis=1)
    x = x.astype(jnp.bfloat16).astype(jnp.float32)
    w1 = params["w1"].astype(jnp.bfloat16).astype(jnp.float32)
    w2 = params["w2"].astype(jnp.bfloat16).astype(jnp.float32)
    h1 = jax.nn.relu(x @ w1.T + params["b1"].reshape(1, -1))
    h1 = h1.astype(jnp.bfloat16).astype(jnp.float32)
    h2 = jax.nn.relu(h1 @ w2.T + params["b2"].reshape(1, -1))
    return h2 @ params["w3"].reshape(-1, 1) + params["b3"].reshape(1, 1)


if __name__ == "__main__":
    # Small shapes consistent with the module: batch=8, states=12, actions=4,
    # hidden=32, hidden1=32.
    batch, states_dim, actions_dim, hidden_dim, hidden_dim1 = 8, 12, 4, 32, 32

    key = jax.random.PRNGKey(0)
    k_param, k_state, k_action = jax.random.split(key, 3)

    params = init_critic_params(k_param, states_dim, actions_dim,
                                hidden_dim, hidden_dim1, init_w=0.003)
    state = jax.random.normal(k_state, (batch, states_dim), jnp.float32)
    action = jax.random.normal(k_action, (batch, actions_dim), jnp.float32)

    q = jax.block_until_ready(critic_forward(state, action, params))
    q_ref = critic_reference(state, action, params)
    assert q.shape == (batch, 1), q.shape
    assert jnp.allclose(q, q_ref, atol=2e-4, rtol=2e-3), (q, q_ref)

    # Multi-tile grid with a partial (ragged) last tile: 300 rows, 128-wide tiles.
    batch2 = 300
    k_s2, k_a2 = jax.random.split(jax.random.PRNGKey(1))
    state2 = jax.random.normal(k_s2, (batch2, states_dim), jnp.float32)
    action2 = jax.random.normal(k_a2, (batch2, actions_dim), jnp.float32)
    q2_ref = critic_reference(state2, action2, params)

    q2 = jax.block_until_ready(critic_forward(state2, action2, params,
                                              tile_b=128))
    assert q2.shape == (batch2, 1), q2.shape
    assert jnp.allclose(q2, q2_ref, atol=2e-4, rtol=2e-3), \
        float(jnp.max(jnp.abs(q2 - q2_ref)))

    # Default tile selection: single 384-wide tile exactly covering the batch.
    q3 = jax.block_until_ready(critic_forward(state2, action2, params))
    assert q3.shape == (batch2, 1), q3.shape
    assert jnp.allclose(q3, q2_ref, atol=2e-4, rtol=2e-3), \
        float(jnp.max(jnp.abs(q3 - q2_ref)))

    print("KERNEL_OK")
</pallas_src>

<mosaic_0001>
module attributes {stable_mosaic.version = 11 : i64} {
  func.func @_critic_kernel(%arg0: i32, %arg1: memref<128x12xf32, #tpu.memory_space<vmem>>, %arg2: memref<128x4xf32, #tpu.memory_space<vmem>>, %arg3: memref<12x32xbf16, #tpu.memory_space<vmem>>, %arg4: memref<4x32xbf16, #tpu.memory_space<vmem>>, %arg5: memref<1x32xf32, #tpu.memory_space<vmem>>, %arg6: memref<32x32xbf16, #tpu.memory_space<vmem>>, %arg7: memref<1x32xf32, #tpu.memory_space<vmem>>, %arg8: memref<1x32xf32, #tpu.memory_space<vmem>>, %arg9: memref<1x1xf32, #tpu.memory_space<smem>>, %arg10: memref<128x1xf32, #tpu.memory_space<vmem>>) attributes {dimension_semantics = [#tpu.dimension_semantics<parallel>], iteration_bounds = array<i64: 1>, scalar_prefetch = 0 : i64, scratch_operands = 0 : i64, tpu.core_type = #tpu.core_type<tc>, window_params = [{transform_indices = @transform_0, window_bounds = array<i64: 128, 12>}, {transform_indices = @transform_1, window_bounds = array<i64: 128, 4>}, {pipeline_mode = #tpu.pipeline_mode<synchronous>, transform_indices = @transform_2, window_bounds = array<i64: 12, 32>}, {pipeline_mode = #tpu.pipeline_mode<synchronous>, transform_indices = @transform_3, window_bounds = array<i64: 4, 32>}, {pipeline_mode = #tpu.pipeline_mode<synchronous>, transform_indices = @transform_4, window_bounds = array<i64: 1, 32>}, {pipeline_mode = #tpu.pipeline_mode<synchronous>, transform_indices = @transform_5, window_bounds = array<i64: 32, 32>}, {pipeline_mode = #tpu.pipeline_mode<synchronous>, transform_indices = @transform_6, window_bounds = array<i64: 1, 32>}, {pipeline_mode = #tpu.pipeline_mode<synchronous>, transform_indices = @transform_7, window_bounds = array<i64: 1, 32>}, {transform_indices = @transform_8, window_bounds = array<i64: 1, 1>}, {transform_indices = @transform_9, window_bounds = array<i64: 128, 1>}]} {
    %c0 = arith.constant 0 : index
    %c0_0 = arith.constant 0 : index
    %0 = vector.load %arg1[%c0, %c0_0] : memref<128x12xf32, #tpu.memory_space<vmem>>, vector<128x12xf32>
    %1 = arith.truncf %0 : vector<128x12xf32> to vector<128x12xbf16>
    %c0_1 = arith.constant 0 : index
    %c0_2 = arith.constant 0 : index
    %2 = vector.load %arg2[%c0_1, %c0_2] : memref<128x4xf32, #tpu.memory_space<vmem>>, vector<128x4xf32>
    %3 = arith.truncf %2 : vector<128x4xf32> to vector<128x4xbf16>
    %c0_3 = arith.constant 0 : index
    %c0_4 = arith.constant 0 : index
    %4 = vector.load %arg3[%c0_3, %c0_4] : memref<12x32xbf16, #tpu.memory_space<vmem>>, vector<12x32xbf16>
    %cst = arith.constant dense<0.000000e+00> : vector<128x32xf32>
    %5 = tpu.matmul %1, %4, %cst {dimension_numbers = #tpu.dot_dimension_numbers<[1], [0], [0], [1], [0, 0, 1, 1], [], []>} : vector<128x12xbf16>, vector<12x32xbf16>, vector<128x32xf32> -> vector<128x32xf32>
    %c0_5 = arith.constant 0 : index
    %c0_6 = arith.constant 0 : index
    %6 = vector.load %arg4[%c0_5, %c0_6] : memref<4x32xbf16, #tpu.memory_space<vmem>>, vector<4x32xbf16>
    %cst_7 = arith.constant dense<0.000000e+00> : vector<128x32xf32>
    %7 = tpu.matmul %3, %6, %cst_7 {dimension_numbers = #tpu.dot_dimension_numbers<[1], [0], [0], [1], [0, 0, 1, 1], [], []>} : vector<128x4xbf16>, vector<4x32xbf16>, vector<128x32xf32> -> vector<128x32xf32>
    %8 = arith.addf %5, %7 : vector<128x32xf32>
    %c0_8 = arith.constant 0 : index
    %c0_9 = arith.constant 0 : index
    %9 = vector.load %arg5[%c0_8, %c0_9] : memref<1x32xf32, #tpu.memory_space<vmem>>, vector<1x32xf32>
    %10 = vector.broadcast %9 : vector<1x32xf32> to vector<128x32xf32>
    %11 = arith.addf %8, %10 : vector<128x32xf32>
    %cst_10 = arith.constant 0.000000e+00 : f32
    %12 = vector.broadcast %cst_10 : f32 to vector<128x32xf32>
    %13 = arith.maximumf %11, %12 : vector<128x32xf32>
    %14 = arith.truncf %13 : vector<128x32xf32> to vector<128x32xbf16>
    %c0_11 = arith.constant 0 : index
    %c0_12 = arith.constant 0 : index
    %15 = vector.load %arg6[%c0_11, %c0_12] : memref<32x32xbf16, #tpu.memory_space<vmem>>, vector<32x32xbf16>
    %cst_13 = arith.constant dense<0.000000e+00> : vector<128x32xf32>
    %16 = tpu.matmul %14, %15, %cst_13 {dimension_numbers = #tpu.dot_dimension_numbers<[1], [0], [0], [1], [0, 0, 1, 1], [], []>} : vector<128x32xbf16>, vector<32x32xbf16>, vector<128x32xf32> -> vector<128x32xf32>
    %c0_14 = arith.constant 0 : index
    %c0_15 = arith.constant 0 : index
    %17 = vector.load %arg7[%c0_14, %c0_15] : memref<1x32xf32, #tpu.memory_space<vmem>>, vector<1x32xf32>
    %18 = vector.broadcast %17 : vector<1x32xf32> to vector<128x32xf32>
    %19 = arith.addf %16, %18 : vector<128x32xf32>
    %cst_16 = arith.constant 0.000000e+00 : f32
    %20 = vector.broadcast %cst_16 : f32 to vector<128x32xf32>
    %21 = arith.maximumf %19, %20 : vector<128x32xf32>
    %c0_17 = arith.constant 0 : index
    %c0_18 = arith.constant 0 : index
    %22 = vector.load %arg8[%c0_17, %c0_18] : memref<1x32xf32, #tpu.memory_space<vmem>>, vector<1x32xf32>
    %23 = vector.broadcast %22 : vector<1x32xf32> to vector<128x32xf32>
    %24 = arith.mulf %21, %23 : vector<128x32xf32>
    %cst_19 = arith.constant dense<0.000000e+00> : vector<128xf32>
    %25 = vector.multi_reduction <add>, %24, %cst_19 [1] : vector<128x32xf32> to vector<128xf32>
    %26 = vector.shape_cast %25 : vector<128xf32> to vector<128x1xf32>
    %c0_20 = arith.constant 0 : index
    %c0_21 = arith.constant 0 : index
    %27 = memref.load %arg9[%c0_20, %c0_21] : memref<1x1xf32, #tpu.memory_space<smem>>
    %28 = vector.broadcast %27 : f32 to vector<128x1xf32>
    %29 = arith.addf %26, %28 : vector<128x1xf32>
    %c0_22 = arith.constant 0 : index
    %c0_23 = arith.constant 0 : index
    %30 = vector.load %arg10[%c0_22, %c0_23] : memref<128x1xf32, #tpu.memory_space<vmem>>, vector<128x1xf32>
    tpu.vector_store %arg10[%c0_22, %c0_23], %29 {strides = array<i32>} : memref<128x1xf32, #tpu.memory_space<vmem>>, vector<128x1xf32>,
    return
  }
  func.func @transform_0(%arg0: i32) -> (i32, i32) {
    %c0_i32 = arith.constant 0 : i32
    %c0_i32_0 = arith.constant 0 : i32
    return %arg0, %c0_i32 : i32, i32
  }
  func.func @transform_1(%arg0: i32) -> (i32, i32) {
    %c0_i32 = arith.constant 0 : i32
    %c0_i32_0 = arith.constant 0 : i32
    return %arg0, %c0_i32 : i32, i32
  }
  func.func @transform_2(%arg0: i32) -> (i32, i32) {
    %c0_i32 = arith.constant 0 : i32
    %c0_i32_0 = arith.constant 0 : i32
    %c0_i32_1 = arith.constant 0 : i32
    return %c0_i32, %c0_i32_0 : i32, i32
  }
  func.func @transform_3(%arg0: i32) -> (i32, i32) {
    %c0_i32 = arith.constant 0 : i32
    %c0_i32_0 = arith.constant 0 : i32
    %c0_i32_1 = arith.constant 0 : i32
    return %c0_i32, %c0_i32_0 : i32, i32
  }
  func.func @transform_4(%arg0: i32) -> (i32, i32) {
    %c0_i32 = arith.constant 0 : i32
    %c0_i32_0 = arith.constant 0 : i32
    %c0_i32_1 = arith.constant 0 : i32
    return %c0_i32, %c0_i32_0 : i32, i32
  }
  func.func @transform_5(%arg0: i32) -> (i32, i32) {
    %c0_i32 = arith.constant 0 : i32
    %c0_i32_0 = arith.constant 0 : i32
    %c0_i32_1 = arith.constant 0 : i32
    return %c0_i32, %c0_i32_0 : i32, i32
  }
  func.func @transform_6(%arg0: i32) -> (i32, i32) {
    %c0_i32 = arith.constant 0 : i32
    %c0_i32_0 = arith.constant 0 : i32
    %c0_i32_1 = arith.constant 0 : i32
    return %c0_i32, %c0_i32_0 : i32, i32
  }
  func.func @transform_7(%arg0: i32) -> (i32, i32) {
    %c0_i32 = arith.constant 0 : i32
    %c0_i32_0 = arith.constant 0 : i32
    %c0_i32_1 = arith.constant 0 : i32
    return %c0_i32, %c0_i32_0 : i32, i32
  }
  func.func @transform_8(%arg0: i32) -> (i32, i32) {
    %c0_i32 = arith.constant 0 : i32
    %c0_i32_0 = arith.constant 0 : i32
    %c0_i32_1 = arith.constant 0 : i32
    return %c0_i32, %c0_i32_0 : i32, i32
  }
  func.func @transform_9(%arg0: i32) -> (i32, i32) {
    %c0_i32 = arith.constant 0 : i32
    %c0_i32_0 = arith.constant 0 : i32
    return %arg0, %c0_i32 : i32, i32
  }
}

</mosaic_0001>

<llo_original>
// kernel: tpu_custom_call.1
$region0: #{tpu_custom_call.1}
  #allocation0 [shape = 'u32[]', space=smem, size = 0x4, offset = 0x4, fixed_abs, tag = 'smem constant byte address 0x4 - core index']
  #allocation1 [shape = 'u32[144,128]{1,0:T(1,128)}', space=vmem, size = 0x12000, scoped, tag = 'internal scratch']
  #allocation2 [shape = 'f32[1,1]{1,0:T(1,128)S(6)}', space=smem, size = 0x200, scoped, tag = 'scoped memory for tpu_custom_call.1']
  %s0 = inlined_call_operand.hbm [shape: f32[8,12], index: 0, kind: input, shape index: {}]
  %s1 = inlined_call_operand.vmem [shape: f32[8,4], index: 1, kind: input, shape index: {}]
  %s2 = inlined_call_operand.hbm [shape: bf16[12,32], index: 2, kind: input, shape index: {}]
  %s3 = inlined_call_operand.vmem [shape: bf16[4,32], index: 3, kind: input, shape index: {}]
  %s4 = inlined_call_operand.vmem [shape: f32[1,32], index: 4, kind: input, shape index: {}]
  %s5 = inlined_call_operand.vmem [shape: bf16[32,32], index: 5, kind: input, shape index: {}]
  %s6 = inlined_call_operand.vmem [shape: f32[1,32], index: 6, kind: input, shape index: {}]
  %s7 = inlined_call_operand.vmem [shape: f32[1,32], index: 7, kind: input, shape index: {}]
  %s8 = inlined_call_operand.<no memory space> [shape: f32[1,1], index: 8, kind: input, shape index: {}]
  %s9 = inlined_call_operand.vmem [shape: f32[8,1], index: 9, kind: output, shape index: {}]
  %s10 = sld [smem:[#allocation0]]
  $region88: #{tpu_custom_call.1} parent=0
    _
  %s12 = ssub.s32 1, %s10
  %s13 = scalar_select 0, %s12, %s10
  %14 = sst [smem:[#allocation2]] %s8
  $region1: #{tpu_custom_call.1} parent=0
    #allocation3 [shape = 'u8[65536]{0}', space=vmem, size = 0x10000, scoped, tag = 'input window, operand 0, single buffered']
    #allocation4 [shape = 's32[1]{0}', space=sflag, size = 0x4, scoped, tag = 'scoped memory for tpu_custom_call.1']
    #allocation5 [shape = 'u8[4096]{0}', space=vmem, size = 0x1000, scoped, tag = 'input window, operand 2, single buffered']
    #allocation6 [shape = 's32[1]{0}', space=sflag, size = 0x4, scoped, tag = 'scoped memory for tpu_custom_call.1']
    #allocation7 [shape = 'u8[65536]{0}', space=vmem, size = 0x10000, scoped, tag = 'output window, operand 0, single buffered']
    %15 = vsyncpa [#allocation4], 0
    %16 = vsyncpa [#allocation6], 0
    // Predicated region
    $region2: #{tpu_custom_call.1} parent=1 // pred_check
      _
    $region3: #{tpu_custom_call.1} parent=1 // pred_check_branch
      %18 = sbr.rel (0) target = $region5
    $region4: #{tpu_custom_call.1} parent=1 // pred_region
      %s20 = ssub.s32 2048, 128
      %21 = vsyncadd [#allocation4], %s20
      %s22 = sshll.u32 [#allocation3], 4
      %s23 = int_to_ptr.vmem [resolvable:$true] %s22
      %28 = dma.hbm_to_vmem [thread:$0]  %s0, 128, %s23, [#allocation4], 128, 128, 8
    $region5: #{tpu_custom_call.1} parent=1 // pred_fallthru
      _
    // Predicated region
    $region6: #{tpu_custom_call.1} parent=1 // pred_check
      _
    $region7: #{tpu_custom_call.1} parent=1 // pred_check_branch
      %30 = sbr.rel (0) target = $region9
    $region8: #{tpu_custom_call.1} parent=1 // pred_region
      _
    $region9: #{tpu_custom_call.1} parent=1 // pred_fallthru
      _
    // Predicated region
    $region10: #{tpu_custom_call.1} parent=1 // pred_check
      _
    $region11: #{tpu_custom_call.1} parent=1 // pred_check_branch
      %32 = sbr.rel (0) target = $region13
    $region12: #{tpu_custom_call.1} parent=1 // pred_region
      %s34 = ssub.s32 128, 128
      %35 = vsyncadd [#allocation6], %s34
      %s36 = sshll.u32 [#allocation5], 4
      %s37 = int_to_ptr.vmem [resolvable:$true] %s36
      %42 = dma.hbm_to_vmem [thread:$0]  %s2, 128, %s37, [#allocation6], 64, 64, 4
    $region13: #{tpu_custom_call.1} parent=1 // pred_fallthru
      _
    // Predicated region
    $region14: #{tpu_custom_call.1} parent=1 // pred_check
      _
    $region15: #{tpu_custom_call.1} parent=1 // pred_check_branch
      %44 = sbr.rel (0) target = $region17
    $region16: #{tpu_custom_call.1} parent=1 // pred_region
      _
    $region17: #{tpu_custom_call.1} parent=1 // pred_fallthru
      _
    // Predicated region
    $region18: #{tpu_custom_call.1} parent=1 // pred_check
      _
    $region19: #{tpu_custom_call.1} parent=1 // pred_check_branch
      %46 = sbr.rel (0) target = $region21
    $region20: #{tpu_custom_call.1} parent=1 // pred_region
      _
    $region21: #{tpu_custom_call.1} parent=1 // pred_fallthru
      _
    // Predicated region
    $region22: #{tpu_custom_call.1} parent=1 // pred_check
      _
    $region23: #{tpu_custom_call.1} parent=1 // pred_check_branch
      %48 = sbr.rel (0) target = $region25
    $region24: #{tpu_custom_call.1} parent=1 // pred_region
      _
    $region25: #{tpu_custom_call.1} parent=1 // pred_fallthru
      _
    // Predicated region
    $region26: #{tpu_custom_call.1} parent=1 // pred_check
      _
    $region27: #{tpu_custom_call.1} parent=1 // pred_check_branch
      %50 = sbr.rel (0) target = $region29
    $region28: #{tpu_custom_call.1} parent=1 // pred_region
      _
    $region29: #{tpu_custom_call.1} parent=1 // pred_fallthru
      _
    // Predicated region
    $region30: #{tpu_custom_call.1} parent=1 // pred_check
      _
    $region31: #{tpu_custom_call.1} parent=1 // pred_check_branch
      %52 = sbr.rel (0) target = $region33
    $region32: #{tpu_custom_call.1} parent=1 // pred_region
      _
    $region33: #{tpu_custom_call.1} parent=1 // pred_fallthru
      _
    // Predicated region
    $region34: #{tpu_custom_call.1} parent=1 // pred_check
      _
    $region35: #{tpu_custom_call.1} parent=1 // pred_check_branch
      %54 = sbr.rel (0) target = $region37
    $region36: #{tpu_custom_call.1} parent=1 // pred_region
      _
    $region37: #{tpu_custom_call.1} parent=1 // pred_fallthru
      _
    // Predicated region
    $region38: #{tpu_custom_call.1} parent=1 // pred_check
      _
    $region39: #{tpu_custom_call.1} parent=1 // pred_check_branch
      %56 = sbr.rel (0) target = $region41
    $region40: #{tpu_custom_call.1} parent=1 // pred_region
      %57 = dma.done [#allocation4], 2048
    $region41: #{tpu_custom_call.1} parent=1 // pred_fallthru
      _
    // Predicated region
    $region42: #{tpu_custom_call.1} parent=1 // pred_check
      _
    $region43: #{tpu_custom_call.1} parent=1 // pred_check_branch
      %59 = sbr.rel (0) target = $region45
    $region44: #{tpu_custom_call.1} parent=1 // pred_region
      %60 = dma.done [#allocation6], 128
    $region45: #{tpu_custom_call.1} parent=1 // pred_fallthru
      _
    %v62 = vld [vmem:[#allocation3] sm:$0xff]
    %v63 = vld [vmem:[#allocation3 + $0x8] sm:$0xff]
    %v64 = vld [vmem:[#allocation3 + $0x10] sm:$0xff]
    %v65 = vld [vmem:[#allocation3 + $0x18] sm:$0xff]
    %v66 = vld [vmem:[#allocation3 + $0x20] sm:$0xff]
    %v67 = vld [vmem:[#allocation3 + $0x28] sm:$0xff]
    %v68 = vld [vmem:[#allocation3 + $0x30] sm:$0xff]
    %v69 = vld [vmem:[#allocation3 + $0x38] sm:$0xff]
    %v70 = vld [vmem:[#allocation3 + $0x40] sm:$0xff]
    %v71 = vld [vmem:[#allocation3 + $0x48] sm:$0xff]
    %v72 = vld [vmem:[#allocation3 + $0x50] sm:$0xff]
    %v73 = vld [vmem:[#allocation3 + $0x58] sm:$0xff]
    %v74 = vld [vmem:[#allocation3 + $0x60] sm:$0xff]
    %v75 = vld [vmem:[#allocation3 + $0x68] sm:$0xff]
    %v76 = vld [vmem:[#allocation3 + $0x70] sm:$0xff]
    %v77 = vld [vmem:[#allocation3 + $0x78] sm:$0xff]
    %v78 = vpack.c.bf16 %v63, %v62
    %v79 = vpack.c.bf16 %v65, %v64
    %v80 = vpack.c.bf16 %v67, %v66
    %v81 = vpack.c.bf16 %v69, %v68
    %v82 = vpack.c.bf16 %v71, %v70
    %v83 = vpack.c.bf16 %v73, %v72
    %v84 = vpack.c.bf16 %v75, %v74
    %v85 = vpack.c.bf16 %v77, %v76
    %v86 = vld [vmem:[%s1] sm:$0xff]
    %v87 = vld [vmem:[%s1 + $0x8] sm:$0xff]
    %v88 = vld [vmem:[%s1 + $0x10] sm:$0xff]
    %v89 = vld [vmem:[%s1 + $0x18] sm:$0xff]
    %v90 = vld [vmem:[%s1 + $0x20] sm:$0xff]
    %v91 = vld [vmem:[%s1 + $0x28] sm:$0xff]
    %v92 = vld [vmem:[%s1 + $0x30] sm:$0xff]
    %v93 = vld [vmem:[%s1 + $0x38] sm:$0xff]
    %v94 = vld [vmem:[%s1 + $0x40] sm:$0xff]
    %v95 = vld [vmem:[%s1 + $0x48] sm:$0xff]
    %v96 = vld [vmem:[%s1 + $0x50] sm:$0xff]
    %v97 = vld [vmem:[%s1 + $0x58] sm:$0xff]
    %v98 = vld [vmem:[%s1 + $0x60] sm:$0xff]
    %v99 = vld [vmem:[%s1 + $0x68] sm:$0xff]
    %v100 = vld [vmem:[%s1 + $0x70] sm:$0xff]
    %v101 = vld [vmem:[%s1 + $0x78] sm:$0xff]
    %v102 = vpack.c.bf16 %v87, %v86
    %v103 = vpack.c.bf16 %v89, %v88
    %v104 = vpack.c.bf16 %v91, %v90
    %v105 = vpack.c.bf16 %v93, %v92
    %v106 = vpack.c.bf16 %v95, %v94
    %v107 = vpack.c.bf16 %v97, %v96
    %v108 = vpack.c.bf16 %v99, %v98
    %v109 = vpack.c.bf16 %v101, %v100
    %v110 = vld [vmem:[#allocation5] sm:$0xf]
    %v111 = vld [vmem:[#allocation5 + $0x4] sm:$0x3]
    %v112 = vld [vmem:[%s3] sm:$0x3]
    %vm113 = vcmask 31744
    %v115 = vsel %vm113, %v102, 0
    %v118 = vsel %vm113, %v103, 0
    %v121 = vsel %vm113, %v104, 0
    %v124 = vsel %vm113, %v105, 0
    %v127 = vsel %vm113, %v106, 0
    %v130 = vsel %vm113, %v107, 0
    %v133 = vsel %vm113, %v108, 0
    %v136 = vsel %vm113, %v109, 0
    %vm138 = vcmask 1041408
    %v140 = vsel %vm138, %v112, 0
    %142 = vmatprep.subr.bf16.mxu0 0
    %143 = vmatpush1.bf16.msra.mxu0 0
    %144 = vmatprep.subr.bf16.mxu0 0
    %145 = vmatpush1.bf16.msra.mxu0 0
    %146 = vmatprep.subr.bf16.mxu0 0
    %147 = vmatpush1.bf16.msra.mxu0 0
    %148 = vmatprep.subr.bf16.mxu0 0
    %149 = vmatpush1.bf16.msra.mxu0 0
    %150 = vmatprep.subr.bf16.mxu0 0
    %151 = vmatpush1.bf16.msra.mxu0 0
    %152 = vmatprep.subr.bf16.mxu0 0
    %153 = vmatpush1.bf16.msra.mxu0 0
    %154 = vmatprep.subr.bf16.mxu0 0
    %155 = vmatpush1.bf16.msra.mxu0 0
    %156 = vmatprep.subr.bf16.mxu0 0
    %157 = vmatpush1.bf16.msra.mxu0 %v140
    %158 = vmatprep.subr.bf16.mxu0 0
    %159 = vmatpush2.bf16.msra.mxu0 0
    %160 = vmatprep.subr.bf16.mxu0 0
    %161 = vmatpush2.bf16.msra.mxu0 0
    %162 = vmatprep.subr.bf16.mxu0 0
    %163 = vmatpush2.bf16.msra.mxu0 0
    %164 = vmatprep.subr.bf16.mxu0 0
    %165 = vmatpush2.bf16.msra.mxu0 0
    %166 = vmatprep.subr.bf16.mxu0 0
    %167 = vmatpush2.bf16.msra.mxu0 0
    %168 = vmatprep.subr.bf16.mxu0 0
    %169 = vmatpush2.bf16.msra.mxu0 0
    %170 = vmatprep.subr.bf16.mxu0 0
    %171 = vmatpush2.bf16.msra.mxu0 0
    %172 = vmatprep.subr.bf16.mxu0 0
    %173 = vmatpush2.bf16.msra.mxu0 0
    %174 = vmatprep.mubr.bf16.mxu0 0
    %175 = vmatmul.mubr.bf16.gmra.mxu0 %v115
    %v176 = vpop.f32.mrf.mxu0
    %v177 = vadd.f32 0.0, %v176
    %v178 = vpop.f32.mrf.mxu0
    %v179 = vpop.f32.mrf.mxu0
    %v180 = vadd.f32 0.0, %v179
    %v181 = vpop.f32.mrf.mxu0
    %182 = vmatprep.mubr.bf16.mxu0 0
    %183 = vmatmul.mubr.bf16.gmra.mxu0 %v118
    %v184 = vpop.f32.mrf.mxu0
    %v185 = vadd.f32 0.0, %v184
    %v186 = vpop.f32.mrf.mxu0
    %v187 = vpop.f32.mrf.mxu0
    %v188 = vadd.f32 0.0, %v187
    %v189 = vpop.f32.mrf.mxu0
    %190 = vmatprep.mubr.bf16.mxu0 0
    %191 = vmatmul.mubr.bf16.gmra.mxu0 %v121
    %v192 = vpop.f32.mrf.mxu0
    %v193 = vadd.f32 0.0, %v192
    %v194 = vpop.f32.mrf.mxu0
    %v195 = vpop.f32.mrf.mxu0
    %v196 = vadd.f32 0.0, %v195
    %v197 = vpop.f32.mrf.mxu0
    %198 = vmatprep.mubr.bf16.mxu0 0
    %199 = vmatmul.mubr.bf16.gmra.mxu0 %v124
    %v200 = vpop.f32.mrf.mxu0
    %v201 = vadd.f32 0.0, %v200
    %v202 = vpop.f32.mrf.mxu0
    %v203 = vpop.f32.mrf.mxu0
    %v204 = vadd.f32 0.0, %v203
    %v205 = vpop.f32.mrf.mxu0
    %206 = vmatprep.mubr.bf16.mxu0 0
    %207 = vmatmul.mubr.bf16.gmra.mxu0 %v127
    %v208 = vpop.f32.mrf.mxu0
    %v209 = vadd.f32 0.0, %v208
    %v210 = vpop.f32.mrf.mxu0
    %v211 = vpop.f32.mrf.mxu0
    %v212 = vadd.f32 0.0, %v211
    %v213 = vpop.f32.mrf.mxu0
    %214 = vmatprep.mubr.bf16.mxu0 0
    %215 = vmatmul.mubr.bf16.gmra.mxu0 %v130
    %v216 = vpop.f32.mrf.mxu0
    %v217 = vadd.f32 0.0, %v216
    %v218 = vpop.f32.mrf.mxu0
    %v219 = vpop.f32.mrf.mxu0
    %v220 = vadd.f32 0.0, %v219
    %v221 = vpop.f32.mrf.mxu0
    %222 = vmatprep.mubr.bf16.mxu0 0
    %223 = vmatmul.mubr.bf16.gmra.mxu0 %v133
    %v224 = vpop.f32.mrf.mxu0
    %v225 = vadd.f32 0.0, %v224
    %v226 = vpop.f32.mrf.mxu0
    %v227 = vpop.f32.mrf.mxu0
    %v228 = vadd.f32 0.0, %v227
    %v229 = vpop.f32.mrf.mxu0
    %230 = vmatprep.mubr.bf16.mxu0 0
    %231 = vmatmul.mubr.bf16.gmra.mxu0 %v136
    %v232 = vpop.f32.mrf.mxu0
    %v233 = vadd.f32 0.0, %v232
    %v234 = vpop.f32.mrf.mxu0
    %v235 = vpop.f32.mrf.mxu0
    %v236 = vadd.f32 0.0, %v235
    %v237 = vpop.f32.mrf.mxu0
    %238 = vdwg.mxu0
    %v241 = vunpack.c.l.b16 %v110
    %v242 = vunpack.c.l.b16 %v111
    %v243 = vpack.c.b16 %v242, %v241
    %vm244 = vcmask 97280
    %v246 = vsel %vm244, %v78, 0
    %v249 = vsel %vm244, %v79, 0
    %v252 = vsel %vm244, %v80, 0
    %v255 = vsel %vm244, %v81, 0
    %v258 = vsel %vm244, %v82, 0
    %v261 = vsel %vm244, %v83, 0
    %v264 = vsel %vm244, %v84, 0
    %v267 = vsel %vm244, %v85, 0
    %vm269 = vcmask 1045504
    %v271 = vsel %vm269, %v243, 0
    %273 = vmatprep.subr.bf16.mxu0 0
    %274 = vmatpush1.bf16.msra.mxu0 0
    %275 = vmatprep.subr.bf16.mxu0 0
    %276 = vmatpush1.bf16.msra.mxu0 0
    %277 = vmatprep.subr.bf16.mxu0 0
    %278 = vmatpush1.bf16.msra.mxu0 0
    %279 = vmatprep.subr.bf16.mxu0 0
    %280 = vmatpush1.bf16.msra.mxu0 0
    %281 = vmatprep.subr.bf16.mxu0 0
    %282 = vmatpush1.bf16.msra.mxu0 0
    %283 = vmatprep.subr.bf16.mxu0 0
    %284 = vmatpush1.bf16.msra.mxu0 0
    %285 = vmatprep.subr.bf16.mxu0 0
    %286 = vmatpush1.bf16.msra.mxu0 0
    %287 = vmatprep.subr.bf16.mxu0 0
    %288 = vmatpush1.bf16.msra.mxu0 %v271
    %289 = vmatprep.subr.bf16.mxu0 0
    %290 = vmatpush2.bf16.msra.mxu0 0
    %291 = vmatprep.subr.bf16.mxu0 0
    %292 = vmatpush2.bf16.msra.mxu0 0
    %293 = vmatprep.subr.bf16.mxu0 0
    %294 = vmatpush2.bf16.msra.mxu0 0
    %295 = vmatprep.subr.bf16.mxu0 0
    %296 = vmatpush2.bf16.msra.mxu0 0
    %297 = vmatprep.subr.bf16.mxu0 0
    %298 = vmatpush2.bf16.msra.mxu0 0
    %299 = vmatprep.subr.bf16.mxu0 0
    %300 = vmatpush2.bf16.msra.mxu0 0
    %301 = vmatprep.subr.bf16.mxu0 0
    %302 = vmatpush2.bf16.msra.mxu0 0
    %303 = vmatprep.subr.bf16.mxu0 0
    %304 = vmatpush2.bf16.msra.mxu0 0
    %305 = vmatprep.mubr.bf16.mxu0 0
    %306 = vmatmul.mubr.bf16.gmra.mxu0 %v246
    %v307 = vpop.f32.mrf.mxu0
    %v308 = vadd.f32 %v177, %v307
    %v309 = vpop.f32.mrf.mxu0
    %v310 = vpop.f32.mrf.mxu0
    %v311 = vadd.f32 %v180, %v310
    %v312 = vpop.f32.mrf.mxu0
    %313 = vmatprep.mubr.bf16.mxu0 0
    %314 = vmatmul.mubr.bf16.gmra.mxu0 %v249
    %v315 = vpop.f32.mrf.mxu0
    %v316 = vadd.f32 %v185, %v315
    %v317 = vpop.f32.mrf.mxu0
    %v318 = vpop.f32.mrf.mxu0
    %v319 = vadd.f32 %v188, %v318
    %v320 = vpop.f32.mrf.mxu0
    %321 = vmatprep.mubr.bf16.mxu0 0
    %322 = vmatmul.mubr.bf16.gmra.mxu0 %v252
    %v323 = vpop.f32.mrf.mxu0
    %v324 = vadd.f32 %v193, %v323
    %v325 = vpop.f32.mrf.mxu0
    %v326 = vpop.f32.mrf.mxu0
    %v327 = vadd.f32 %v196, %v326
    %v328 = vpop.f32.mrf.mxu0
    %329 = vmatprep.mubr.bf16.mxu0 0
    %330 = vmatmul.mubr.bf16.gmra.mxu0 %v255
    %v331 = vpop.f32.mrf.mxu0
    %v332 = vadd.f32 %v201, %v331
    %v333 = vpop.f32.mrf.mxu0
    %v334 = vpop.f32.mrf.mxu0
    %v335 = vadd.f32 %v204, %v334
    %v336 = vpop.f32.mrf.mxu0
    %337 = vmatprep.mubr.bf16.mxu0 0
    %338 = vmatmul.mubr.bf16.gmra.mxu0 %v258
    %v339 = vpop.f32.mrf.mxu0
    %v340 = vadd.f32 %v209, %v339
    %v341 = vpop.f32.mrf.mxu0
    %v342 = vpop.f32.mrf.mxu0
    %v343 = vadd.f32 %v212, %v342
    %v344 = vpop.f32.mrf.mxu0
    %345 = vmatprep.mubr.bf16.mxu0 0
    %346 = vmatmul.mubr.bf16.gmra.mxu0 %v261
    %v347 = vpop.f32.mrf.mxu0
    %v348 = vadd.f32 %v217, %v347
    %v349 = vpop.f32.mrf.mxu0
    %v350 = vpop.f32.mrf.mxu0
    %v351 = vadd.f32 %v220, %v350
    %v352 = vpop.f32.mrf.mxu0
    %353 = vmatprep.mubr.bf16.mxu0 0
    %354 = vmatmul.mubr.bf16.gmra.mxu0 %v264
    %v355 = vpop.f32.mrf.mxu0
    %v356 = vadd.f32 %v225, %v355
    %v357 = vpop.f32.mrf.mxu0
    %v358 = vpop.f32.mrf.mxu0
    %v359 = vadd.f32 %v228, %v358
    %v360 = vpop.f32.mrf.mxu0
    %361 = vmatprep.mubr.bf16.mxu0 0
    %362 = vmatmul.mubr.bf16.gmra.mxu0 %v267
    %v363 = vpop.f32.mrf.mxu0
    %v364 = vadd.f32 %v233, %v363
    %v365 = vpop.f32.mrf.mxu0
    %v366 = vpop.f32.mrf.mxu0
    %v367 = vadd.f32 %v236, %v366
    %v368 = vpop.f32.mrf.mxu0
    %369 = vdwg.mxu0
    %v370 = vld [vmem:[%s4] sm:$0x1]
    %v372 = vlaneseq
    %v373 = vshrl.u32 %v372, 7
    %v374 = vsub.s32 0, %v373
    %v375 = vrot.slane %v370, %v374
    %v377 = vadd.f32 %v308, %v375
    %v378 = vadd.f32 %v311, %v375
    %v379 = vadd.f32 %v316, %v375
    %v380 = vadd.f32 %v319, %v375
    %v381 = vadd.f32 %v324, %v375
    %v382 = vadd.f32 %v327, %v375
    %v383 = vadd.f32 %v332, %v375
    %v384 = vadd.f32 %v335, %v375
    %v385 = vadd.f32 %v340, %v375
    %v386 = vadd.f32 %v343, %v375
    %v387 = vadd.f32 %v348, %v375
    %v388 = vadd.f32 %v351, %v375
    %v389 = vadd.f32 %v356, %v375
    %v390 = vadd.f32 %v359, %v375
    %v391 = vadd.f32 %v364, %v375
    %v392 = vadd.f32 %v367, %v375
    %v393 = vmax.f32 %v377, 0.0
    %v394 = vmax.f32 %v378, 0.0
    %v395 = vmax.f32 %v379, 0.0
    %v396 = vmax.f32 %v380, 0.0
    %v397 = vmax.f32 %v381, 0.0
    %v398 = vmax.f32 %v382, 0.0
    %v399 = vmax.f32 %v383, 0.0
    %v400 = vmax.f32 %v384, 0.0
    %v401 = vmax.f32 %v385, 0.0
    %v402 = vmax.f32 %v386, 0.0
    %v403 = vmax.f32 %v387, 0.0
    %v404 = vmax.f32 %v388, 0.0
    %v405 = vmax.f32 %v389, 0.0
    %v406 = vmax.f32 %v390, 0.0
    %v407 = vmax.f32 %v391, 0.0
    %v408 = vmax.f32 %v392, 0.0
    %v409 = vpack.c.bf16 %v394, %v393
    %v410 = vpack.c.bf16 %v396, %v395
    %v411 = vpack.c.bf16 %v398, %v397
    %v412 = vpack.c.bf16 %v400, %v399
    %v413 = vpack.c.bf16 %v402, %v401
    %v414 = vpack.c.bf16 %v404, %v403
    %v415 = vpack.c.bf16 %v406, %v405
    %v416 = vpack.c.bf16 %v408, %v407
    %v417 = vld [vmem:[%s5] sm:$0xf]
    %v418 = vld [vmem:[%s5 + $0x4] sm:$0xf]
    %v419 = vld [vmem:[%s5 + $0x8] sm:$0xf]
    %v420 = vld [vmem:[%s5 + $0xc] sm:$0xf]
    %v421 = vld [vmem:[%s6] sm:$0x1]
    %v423 = vlaneseq
    %v424 = vshrl.u32 %v423, 7
    %v425 = vsub.s32 0, %v424
    %v426 = vrot.slane %v421, %v425
    %v432 = vunpack.c.l.b16 %v417
    %v433 = vunpack.c.l.b16 %v418
    %v434 = vunpack.c.l.b16 %v419
    %v435 = vunpack.c.l.b16 %v420
    %v436 = vpack.c.b16 %v433, %v432
    %v437 = vpack.c.b16 %v435, %v434
    %vm440 = vcmask 261120
    %v442 = vsel %vm440, %v409, 0
    %v445 = vsel %vm440, %v410, 0
    %v448 = vsel %vm440, %v411, 0
    %v451 = vsel %vm440, %v412, 0
    %v454 = vsel %vm440, %v413, 0
    %v457 = vsel %vm440, %v414, 0
    %v460 = vsel %vm440, %v415, 0
    %v463 = vsel %vm440, %v416, 0
    %465 = vmatprep.subr.bf16.mxu0 0
    %466 = vmatpush1.bf16.msra.mxu0 0
    %467 = vmatprep.subr.bf16.mxu0 0
    %468 = vmatpush1.bf16.msra.mxu0 0
    %469 = vmatprep.subr.bf16.mxu0 0
    %470 = vmatpush1.bf16.msra.mxu0 0
    %471 = vmatprep.subr.bf16.mxu0 0
    %472 = vmatpush1.bf16.msra.mxu0 0
    %473 = vmatprep.subr.bf16.mxu0 0
    %474 = vmatpush1.bf16.msra.mxu0 0
    %475 = vmatprep.subr.bf16.mxu0 0
    %476 = vmatpush1.bf16.msra.mxu0 0
    %477 = vmatprep.subr.bf16.mxu0 0
    %478 = vmatpush1.bf16.msra.mxu0 %v437
    %479 = vmatprep.subr.bf16.mxu0 0
    %480 = vmatpush1.bf16.msra.mxu0 %v436
    %481 = vmatprep.subr.bf16.mxu0 0
    %482 = vmatpush2.bf16.msra.mxu0 0
    %483 = vmatprep.subr.bf16.mxu0 0
    %484 = vmatpush2.bf16.msra.mxu0 0
    %485 = vmatprep.subr.bf16.mxu0 0
    %486 = vmatpush2.bf16.msra.mxu0 0
    %487 = vmatprep.subr.bf16.mxu0 0
    %488 = vmatpush2.bf16.msra.mxu0 0
    %489 = vmatprep.subr.bf16.mxu0 0
    %490 = vmatpush2.bf16.msra.mxu0 0
    %491 = vmatprep.subr.bf16.mxu0 0
    %492 = vmatpush2.bf16.msra.mxu0 0
    %493 = vmatprep.subr.bf16.mxu0 0
    %494 = vmatpush2.bf16.msra.mxu0 0
    %495 = vmatprep.subr.bf16.mxu0 0
    %496 = vmatpush2.bf16.msra.mxu0 0
    %497 = vmatprep.mubr.bf16.mxu0 0
    %498 = vmatmul.mubr.bf16.gmra.mxu0 %v442
    %v499 = vpop.f32.mrf.mxu0
    %v500 = vadd.f32 %v426, %v499
    %v501 = vpop.f32.mrf.mxu0
    %v502 = vpop.f32.mrf.mxu0
    %v503 = vadd.f32 %v426, %v502
    %v504 = vpop.f32.mrf.mxu0
    %505 = vmatprep.mubr.bf16.mxu0 0
    %506 = vmatmul.mubr.bf16.gmra.mxu0 %v445
    %v507 = vpop.f32.mrf.mxu0
    %v508 = vadd.f32 %v426, %v507
    %v509 = vpop.f32.mrf.mxu0
    %v510 = vpop.f32.mrf.mxu0
    %v511 = vadd.f32 %v426, %v510
    %v512 = vpop.f32.mrf.mxu0
    %513 = vmatprep.mubr.bf16.mxu0 0
    %514 = vmatmul.mubr.bf16.gmra.mxu0 %v448
    %v515 = vpop.f32.mrf.mxu0
    %v516 = vadd.f32 %v426, %v515
    %v517 = vpop.f32.mrf.mxu0
    %v518 = vpop.f32.mrf.mxu0
    %v519 = vadd.f32 %v426, %v518
    %v520 = vpop.f32.mrf.mxu0
    %521 = vmatprep.mubr.bf16.mxu0 0
    %522 = vmatmul.mubr.bf16.gmra.mxu0 %v451
    %v523 = vpop.f32.mrf.mxu0
    %v524 = vadd.f32 %v426, %v523
    %v525 = vpop.f32.mrf.mxu0
    %v526 = vpop.f32.mrf.mxu0
    %v527 = vadd.f32 %v426, %v526
    %v528 = vpop.f32.mrf.mxu0
    %529 = vmatprep.mubr.bf16.mxu0 0
    %530 = vmatmul.mubr.bf16.gmra.mxu0 %v454
    %v531 = vpop.f32.mrf.mxu0
    %v532 = vadd.f32 %v426, %v531
    %v533 = vpop.f32.mrf.mxu0
    %v534 = vpop.f32.mrf.mxu0
    %v535 = vadd.f32 %v426, %v534
    %v536 = vpop.f32.mrf.mxu0
    %537 = vmatprep.mubr.bf16.mxu0 0
    %538 = vmatmul.mubr.bf16.gmra.mxu0 %v457
    %v539 = vpop.f32.mrf.mxu0
    %v540 = vadd.f32 %v426, %v539
    %v541 = vpop.f32.mrf.mxu0
    %v542 = vpop.f32.mrf.mxu0
    %v543 = vadd.f32 %v426, %v542
    %v544 = vpop.f32.mrf.mxu0
    %545 = vmatprep.mubr.bf16.mxu0 0
    %546 = vmatmul.mubr.bf16.gmra.mxu0 %v460
    %v547 = vpop.f32.mrf.mxu0
    %v548 = vadd.f32 %v426, %v547
    %v549 = vpop.f32.mrf.mxu0
    %v550 = vpop.f32.mrf.mxu0
    %v551 = vadd.f32 %v426, %v550
    %v552 = vpop.f32.mrf.mxu0
    %553 = vmatprep.mubr.bf16.mxu0 0
    %554 = vmatmul.mubr.bf16.gmra.mxu0 %v463
    %v555 = vpop.f32.mrf.mxu0
    %v556 = vadd.f32 %v426, %v555
    %v557 = vpop.f32.mrf.mxu0
    %v558 = vpop.f32.mrf.mxu0
    %v559 = vadd.f32 %v426, %v558
    %v560 = vpop.f32.mrf.mxu0
    %561 = vdwg.mxu0
    %v562 = vmax.f32 %v500, 0.0
    %v563 = vmax.f32 %v503, 0.0
    %v564 = vmax.f32 %v508, 0.0
    %v565 = vmax.f32 %v511, 0.0
    %v566 = vmax.f32 %v516, 0.0
    %v567 = vmax.f32 %v519, 0.0
    %v568 = vmax.f32 %v524, 0.0
    %v569 = vmax.f32 %v527, 0.0
    %v570 = vmax.f32 %v532, 0.0
    %v571 = vmax.f32 %v535, 0.0
    %v572 = vmax.f32 %v540, 0.0
    %v573 = vmax.f32 %v543, 0.0
    %v574 = vmax.f32 %v548, 0.0
    %v575 = vmax.f32 %v551, 0.0
    %v576 = vmax.f32 %v556, 0.0
    %v577 = vmax.f32 %v559, 0.0
    %v578 = vld [vmem:[%s7] sm:$0x1]
    %v580 = vlaneseq
    %v581 = vshrl.u32 %v580, 7
    %v582 = vsub.s32 0, %v581
    %v583 = vrot.slane %v578, %v582
    %v585 = vmul.f32 %v562, %v583
    %v586 = vmul.f32 %v563, %v583
    %v587 = vmul.f32 %v564, %v583
    %v588 = vmul.f32 %v565, %v583
    %v589 = vmul.f32 %v566, %v583
    %v590 = vmul.f32 %v567, %v583
    %v591 = vmul.f32 %v568, %v583
    %v592 = vmul.f32 %v569, %v583
    %v593 = vmul.f32 %v570, %v583
    %v594 = vmul.f32 %v571, %v583
    %v595 = vmul.f32 %v572, %v583
    %v596 = vmul.f32 %v573, %v583
    %v597 = vmul.f32 %v574, %v583
    %v598 = vmul.f32 %v575, %v583
    %v599 = vmul.f32 %v576, %v583
    %v600 = vmul.f32 %v577, %v583
    %v601 = vsel %vm440, %v585, 0.0
    %602 = vadd.xlane.f32.xlu0 %v601
    %v603 = vpop.xlane.xlu0 %602
    %v604 = vsel %vm440, %v586, 0.0
    %605 = vadd.xlane.f32.xlu0 %v604
    %v606 = vpop.xlane.xlu0 %605
    %v607 = vsel %vm440, %v587, 0.0
    %608 = vadd.xlane.f32.xlu0 %v607
    %v609 = vpop.xlane.xlu0 %608
    %v610 = vsel %vm440, %v588, 0.0
    %611 = vadd.xlane.f32.xlu0 %v610
    %v612 = vpop.xlane.xlu0 %611
    %v613 = vsel %vm440, %v589, 0.0
    %614 = vadd.xlane.f32.xlu0 %v613
    %v615 = vpop.xlane.xlu0 %614
    %v616 = vsel %vm440, %v590, 0.0
    %617 = vadd.xlane.f32.xlu0 %v616
    %v618 = vpop.xlane.xlu0 %617
    %v619 = vsel %vm440, %v591, 0.0
    %620 = vadd.xlane.f32.xlu0 %v619
    %v621 = vpop.xlane.xlu0 %620
    %v622 = vsel %vm440, %v592, 0.0
    %623 = vadd.xlane.f32.xlu0 %v622
    %v624 = vpop.xlane.xlu0 %623
    %v625 = vsel %vm440, %v593, 0.0
    %626 = vadd.xlane.f32.xlu0 %v625
    %v627 = vpop.xlane.xlu0 %626
    %v628 = vsel %vm440, %v594, 0.0
    %629 = vadd.xlane.f32.xlu0 %v628
    %v630 = vpop.xlane.xlu0 %629
    %v631 = vsel %vm440, %v595, 0.0
    %632 = vadd.xlane.f32.xlu0 %v631
    %v633 = vpop.xlane.xlu0 %632
    %v634 = vsel %vm440, %v596, 0.0
    %635 = vadd.xlane.f32.xlu0 %v634
    %v636 = vpop.xlane.xlu0 %635
    %v637 = vsel %vm440, %v597, 0.0
    %638 = vadd.xlane.f32.xlu0 %v637
    %v639 = vpop.xlane.xlu0 %638
    %v640 = vsel %vm440, %v598, 0.0
    %641 = vadd.xlane.f32.xlu0 %v640
    %v642 = vpop.xlane.xlu0 %641
    %v643 = vsel %vm440, %v599, 0.0
    %644 = vadd.xlane.f32.xlu0 %v643
    %v645 = vpop.xlane.xlu0 %644
    %v646 = vsel %vm440, %v600, 0.0
    %647 = vadd.xlane.f32.xlu0 %v646
    %v648 = vpop.xlane.xlu0 %647
    %s649 = sld [smem:[#allocation2]]
    %v650 = vstv %s649
    %v651 = vadd.f32 %v603, %v650
    %v652 = vadd.f32 %v606, %v650
    %v653 = vadd.f32 %v609, %v650
    %v654 = vadd.f32 %v612, %v650
    %v655 = vadd.f32 %v615, %v650
    %v656 = vadd.f32 %v618, %v650
    %v657 = vadd.f32 %v621, %v650
    %v658 = vadd.f32 %v624, %v650
    %v659 = vadd.f32 %v627, %v650
    %v660 = vadd.f32 %v630, %v650
    %v661 = vadd.f32 %v633, %v650
    %v662 = vadd.f32 %v636, %v650
    %v663 = vadd.f32 %v639, %v650
    %v664 = vadd.f32 %v642, %v650
    %v665 = vadd.f32 %v645, %v650
    %v666 = vadd.f32 %v648, %v650
    %vm667 = vcmask 7168
    %668 = vst.msk [vmem:[#allocation7] sm:$0xff] %vm667, %v651
    %669 = vst.msk [vmem:[#allocation7 + $0x8] sm:$0xff] %vm667, %v652
    %670 = vst.msk [vmem:[#allocation7 + $0x10] sm:$0xff] %vm667, %v653
    %671 = vst.msk [vmem:[#allocation7 + $0x18] sm:$0xff] %vm667, %v654
    %672 = vst.msk [vmem:[#allocation7 + $0x20] sm:$0xff] %vm667, %v655
    %673 = vst.msk [vmem:[#allocation7 + $0x28] sm:$0xff] %vm667, %v656
    %674 = vst.msk [vmem:[#allocation7 + $0x30] sm:$0xff] %vm667, %v657
    %675 = vst.msk [vmem:[#allocation7 + $0x38] sm:$0xff] %vm667, %v658
    %676 = vst.msk [vmem:[#allocation7 + $0x40] sm:$0xff] %vm667, %v659
    %677 = vst.msk [vmem:[#allocation7 + $0x48] sm:$0xff] %vm667, %v660
    %678 = vst.msk [vmem:[#allocation7 + $0x50] sm:$0xff] %vm667, %v661
    %679 = vst.msk [vmem:[#allocation7 + $0x58] sm:$0xff] %vm667, %v662
    %680 = vst.msk [vmem:[#allocation7 + $0x60] sm:$0xff] %vm667, %v663
    %681 = vst.msk [vmem:[#allocation7 + $0x68] sm:$0xff] %vm667, %v664
    %682 = vst.msk [vmem:[#allocation7 + $0x70] sm:$0xff] %vm667, %v665
    %683 = vst.msk [vmem:[#allocation7 + $0x78] sm:$0xff] %vm667, %v666
    // Predicated region
    $region46: #{tpu_custom_call.1} parent=1 // pred_check
      _
    $region47: #{tpu_custom_call.1} parent=1 // pred_check_branch
      %685 = sbr.rel (0) target = $region49
    $region48: #{tpu_custom_call.1} parent=1 // pred_region
      // Predicated region
      $region50: #{tpu_custom_call.1} parent=48 // pred_check
        _
      $region51: #{tpu_custom_call.1} parent=48 // pred_check_branch
        %687 = sbr.rel (0) target = $region53
      $region52: #{tpu_custom_call.1} parent=48 // pred_region
        // Predicated region
        $region54: #{tpu_custom_call.1} parent=52 // pred_check
          _
        $region55: #{tpu_custom_call.1} parent=52 // pred_check_branch
          %689 = sbr.rel (0) target = $region57
        $region56: #{tpu_custom_call.1} parent=52 // pred_region
          // Predicated region
          $region69: #{tpu_custom_call.1} parent=56 // pred_check
            _
          $region70: #{tpu_custom_call.1} parent=56 // pred_check_branch
            %705 = sbr.rel (0) target = $region72
          $region71: #{tpu_custom_call.1} parent=56 // pred_region
            loop: start=0, step=1, limit=1
            $region73: #{tpu_custom_call.1} parent=71 // loop_pre_header
              _
            $region74: #{tpu_custom_call.1} parent=71 // loop_header
              %s707 = sphi 0, %s711
              %p708 = scmp.ge.s32.totalorder %s707, 1
              %s712 = sphi [#allocation7], [#allocation7]
              %s713 = sphi %s9, %s9
            $region75: #{tpu_custom_call.1} parent=71 // loop_header_branch
              %710 = sbr.rel (%p708) target = $region79
            $region76: #{tpu_custom_call.1} parent=71 // loop_body
              %v714 = vld [vmem:[%s712] sm:$0xff]
              %715 = vst [vmem:[%s713] sm:$0xff] %v714
            $region77: #{tpu_custom_call.1} parent=71 // loop_footer
              %s711 = sadd.s32 1, %s707
            $region78: #{tpu_custom_call.1} parent=71 // loop_footer_branch
              %706 = sbr.rel target = $region74
            $region79: #{tpu_custom_call.1} parent=71 // loop_exit
              _
          $region72: #{tpu_custom_call.1} parent=56 // pred_fallthru
            _
          // Predicated region
          $region80: #{tpu_custom_call.1} parent=56 // pred_check
            _
          $region81: #{tpu_custom_call.1} parent=56 // pred_check_branch
            %717 = sbr.rel target = $region83
          $region82: #{tpu_custom_call.1} parent=56 // pred_region
            _
          $region83: #{tpu_custom_call.1} parent=56 // pred_fallthru
            _
        $region57: #{tpu_custom_call.1} parent=52 // pred_fallthru
          _
        // Predicated region
        $region58: #{tpu_custom_call.1} parent=52 // pred_check
          _
        $region59: #{tpu_custom_call.1} parent=52 // pred_check_branch
          %691 = sbr.rel target = $region61
        $region60: #{tpu_custom_call.1} parent=52 // pred_region
          %s693 = ssub.s32 256, 1
          loop: start=0, step=1, limit=1
          $region62: #{tpu_custom_call.1} parent=60 // loop_pre_header
            _
          $region63: #{tpu_custom_call.1} parent=60 // loop_header
            %s695 = sphi 0, %s699
            %p696 = scmp.ge.s32.totalorder %s695, 1
            %s700 = sphi [#allocation7], [#allocation7]
            %s701 = sphi %s9, %s9
          $region64: #{tpu_custom_call.1} parent=60 // loop_header_branch
            %698 = sbr.rel (%p696) target = $region68
          $region65: #{tpu_custom_call.1} parent=60 // loop_body
            %v702 = vld [vmem:[%s700] sm:%s693]
            %703 = vst [vmem:[%s701] sm:%s693] %v702
          $region66: #{tpu_custom_call.1} parent=60 // loop_footer
            %s699 = sadd.s32 1, %s695
          $region67: #{tpu_custom_call.1} parent=60 // loop_footer_branch
            %694 = sbr.rel target = $region63
          $region68: #{tpu_custom_call.1} parent=60 // loop_exit
            _
        $region61: #{tpu_custom_call.1} parent=52 // pred_fallthru
          _
      $region53: #{tpu_custom_call.1} parent=48 // pred_fallthru
        _
      %718 = vnop
    $region49: #{tpu_custom_call.1} parent=1 // pred_fallthru
      _
    // Predicated region
    $region84: #{tpu_custom_call.1} parent=1 // pred_check
      _
    $region85: #{tpu_custom_call.1} parent=1 // pred_check_branch
      %720 = sbr.rel (0) target = $region87
    $region86: #{tpu_custom_call.1} parent=1 // pred_region
      _
    $region87: #{tpu_custom_call.1} parent=1 // pred_fallthru
      _
    %721 = vsyncpa [#allocation4], 1
    %722 = vsyncpa [#allocation6], 1

</llo_original>
